<compile_context>
chip_gen: v7x
topology: tpu7x:2x2x1
jax: 0.10.0
libtpu: 0.0.40
codegen_flags: <defaults>
</compile_context>

<pallas_src>
import functools

import jax
import jax.numpy as jnp
from jax.experimental import pallas as pl
from jax.experimental.pallas import tpu as pltpu


def _bilinear_weight_matrix(out_size: int, in_size: int) -> jnp.ndarray:
    """1-D bilinear interpolation matrix, PyTorch align_corners=False semantics."""
    scale = in_size / out_size
    dst = jnp.arange(out_size, dtype=jnp.float32)
    src = (dst + 0.5) * scale - 0.5
    # PyTorch clamps negative source coords to 0 for linear modes.
    src = jnp.maximum(src, 0.0)
    lo = jnp.floor(src).astype(jnp.int32)
    lo = jnp.clip(lo, 0, in_size - 1)
    hi = jnp.minimum(lo + 1, in_size - 1)
    frac = src - lo.astype(jnp.float32)
    rows = jnp.arange(out_size)
    w = jnp.zeros((out_size, in_size), jnp.float32)
    w = w.at[rows, lo].add(1.0 - frac)
    w = w.at[rows, hi].add(frac)
    return w


def _choose_planes_per_block(nc, h_in, w_in, h_out, w_out, itemsize):
    """Pick Bp = planes per grid step.

    Prefers divisors of nc that make both matmul slabs lane-dense
    (Bp*W_in and Bp*W_out multiples of 128) while keeping the per-step
    in/out blocks and the block-diagonal weight small enough for VMEM
    (budgeted for v7x's 64 MiB physical VMEM with double-buffering).
    Leaves >=2 grid steps when possible so v7x's two TensorCores both work.
    """
    divisors = [d for d in range(1, nc + 1) if nc % d == 0]

    def ok(d):
        lane_dense = (d * w_in) % 128 == 0 and (d * w_out) % 128 == 0
        io_bytes = d * (h_in * w_in + h_out * w_out) * itemsize   # one in+out block
        kron_bytes = (d * w_in) * (d * w_out) * itemsize          # block-diag Ww^T
        return lane_dense and io_bytes <= (4 << 20) and kron_bytes <= (8 << 20)

    good = [d for d in divisors if ok(d)]
    if not good:
        # Tiny/awkward shapes: one step over everything (blocks == full arrays,
        # which is always a legal BlockSpec).
        return nc
    multi_step = [d for d in good if nc // d >= 2]
    return max(multi_step) if multi_step else max(good)


def _interp_kernel(x_ref, wh_ref, wbd_ref, o_ref):
    # x_ref  : (H_in,    Bp*W_in )  Bp planes folded into the lane dim
    # wh_ref : (H_out,   H_in    )  row-interpolation matrix
    # wbd_ref: (Bp*W_in, Bp*W_out)  block-diag of Ww^T (pre-transposed in wrapper)
    # o_ref  : (H_out,   Bp*W_out)
    dt = x_ref.dtype
    # Row pass: (H_out, H_in) @ (H_in, Bp*W_in) -> (H_out, Bp*W_in), f32 accum.
    tmp = jnp.dot(wh_ref[...], x_ref[...], preferred_element_type=jnp.float32)
    # Column pass: (H_out, Bp*W_in) @ (Bp*W_in, Bp*W_out) -> (H_out, Bp*W_out).
    out = jnp.dot(tmp.astype(dt), wbd_ref[...], preferred_element_type=jnp.float32)
    o_ref[...] = out.astype(o_ref.dtype)


@functools.partial(jax.jit, static_argnames=("size", "mode"))
def interpolate(x: jnp.ndarray, size, mode: str = "bilinear") -> jnp.ndarray:
    """Pallas equivalent of F.interpolate(x, size, mode='bilinear', align_corners=False).

    x: (N, C, H_in, W_in) array (NCHW).  size: (H_out, W_out).
    """
    assert mode == "bilinear", "only mode='bilinear' is implemented"
    n, c, h_in, w_in = x.shape
    h_out, w_out = size
    nc = n * c
    cdt = x.dtype
    itemsize = jnp.dtype(cdt).itemsize

    bp = _choose_planes_per_block(nc, h_in, w_in, h_out, w_out, itemsize)
    grid = nc // bp

    # Interpolation matrices (built once, wrapper side), in the compute dtype.
    wh = _bilinear_weight_matrix(h_out, h_in).astype(cdt)          # (H_out, H_in)
    ww = _bilinear_weight_matrix(w_out, w_in)                      # (W_out, W_in), f32
    # Block-diagonal kron(I_Bp, Ww^T): (Bp*W_in, Bp*W_out).
    eye = jnp.eye(bp, dtype=jnp.float32)
    wbd = (eye[:, None, :, None] * ww.T[None, :, None, :]).reshape(
        bp * w_in, bp * w_out).astype(cdt)

    # Lane-dense input slab: (H_in, NC*W_in)  (planes folded into lanes).
    x_t = x.reshape(nc, h_in, w_in).transpose(1, 0, 2).reshape(h_in, nc * w_in)

    # VMEM budget: double-buffered in/out blocks + resident weight tiles.
    block_bytes = bp * (h_in * w_in + h_out * w_out) * itemsize
    weight_bytes = (h_out * h_in + (bp * w_in) * (bp * w_out)) * itemsize
    vmem_limit = int(min(60 << 20, max(32 << 20, 4 * (block_bytes + weight_bytes))))

    out2d = pl.pallas_call(
        _interp_kernel,
        out_shape=jax.ShapeDtypeStruct((h_out, nc * w_out), cdt),
        grid_spec=pltpu.PrefetchScalarGridSpec(
            num_scalar_prefetch=0,
            grid=(grid,),
            in_specs=[
                pl.BlockSpec((h_in, bp * w_in), lambda i: (0, i)),
                pl.BlockSpec((h_out, h_in), lambda i: (0, 0)),
                pl.BlockSpec((bp * w_in, bp * w_out), lambda i: (0, 0)),
            ],
            out_specs=pl.BlockSpec((h_out, bp * w_out), lambda i: (0, i)),
        ),
        compiler_params=pltpu.CompilerParams(
            dimension_semantics=("parallel",),
            vmem_limit_bytes=vmem_limit),
    )(x_t, wh, wbd)

    # (H_out, NC*W_out) -> (N, C, H_out, W_out)
    return (out2d.reshape(h_out, nc, w_out)
                 .transpose(1, 0, 2)
                 .reshape(n, c, h_out, w_out))


def _reference_interpolate(x, size):
    """Pure-JAX reference (same separable math, no Pallas)."""
    n, c, h_in, w_in = x.shape
    h_out, w_out = size
    wh = _bilinear_weight_matrix(h_out, h_in)
    ww = _bilinear_weight_matrix(w_out, w_in)
    return jnp.einsum("oh,nchw,pw->ncop", wh, x.astype(jnp.float32), ww).astype(x.dtype)


if __name__ == "__main__":
    key = jax.random.PRNGKey(0)
    # Module-implied config: Interpolate(size=(32, 32), mode='bilinear') upsampling
    # a small NCHW feature map.
    x = jax.random.normal(key, (2, 4, 16, 16), dtype=jnp.float32)
    size = (32, 32)

    out = interpolate(x, size=size, mode="bilinear")
    out = jax.block_until_ready(out)

    ref = _reference_interpolate(x, size)
    assert out.shape == (2, 4, 32, 32), out.shape
    assert jnp.allclose(out, ref, atol=1e-5, rtol=1e-5), "mismatch vs reference"

    print("KERNEL_OK")
</pallas_src>

<mosaic_0001>
module attributes {stable_mosaic.version = 11 : i64} {
  func.func private @main(%arg0: i32) attributes {dimension_semantics = [#tpu.dimension_semantics<core_parallel>], iteration_bounds = array<i64: 2>, tpu.core_type = #tpu.core_type<sc_scalar_subcore>, window_params = []} {
    return
  }
}

module attributes {stable_mosaic.version = 11 : i64} {
  func.func private @main(%arg0: i32) attributes {dimension_semantics = [#tpu.dimension_semantics<core_parallel>], iteration_bounds = array<i64: 2>, tpu.core_type = #tpu.core_type<sc_scalar_subcore>, window_params = []} {
    return
  }
}

module attributes {stable_mosaic.version = 11 : i64} {
  func.func @_interp_kernel(%arg0: i32, %arg1: memref<16x128xf32, #tpu.memory_space<vmem>>, %arg2: memref<32x16xf32, #tpu.memory_space<vmem>>, %arg3: memref<128x256xf32, #tpu.memory_space<vmem>>, %arg4: memref<32x256xf32, #tpu.memory_space<vmem>>) attributes {dimension_semantics = [#tpu.dimension_semantics<parallel>], iteration_bounds = array<i64: 1>, scalar_prefetch = 0 : i64, scratch_operands = 0 : i64, tpu.core_type = #tpu.core_type<tc>, window_params = [{transform_indices = @transform_0, window_bounds = array<i64: 16, 128>}, {pipeline_mode = #tpu.pipeline_mode<synchronous>, transform_indices = @transform_1, window_bounds = array<i64: 32, 16>}, {pipeline_mode = #tpu.pipeline_mode<synchronous>, transform_indices = @transform_2, window_bounds = array<i64: 128, 256>}, {transform_indices = @transform_3, window_bounds = array<i64: 32, 256>}]} {
    %c0 = arith.constant 0 : index
    %c0_0 = arith.constant 0 : index
    %0 = vector.load %arg2[%c0, %c0_0] : memref<32x16xf32, #tpu.memory_space<vmem>>, vector<32x16xf32>
    %c0_1 = arith.constant 0 : index
    %c0_2 = arith.constant 0 : index
    %1 = vector.load %arg1[%c0_1, %c0_2] : memref<16x128xf32, #tpu.memory_space<vmem>>, vector<16x128xf32>
    %cst = arith.constant dense<0.000000e+00> : vector<32x128xf32>
    %2 = tpu.matmul %0, %1, %cst {dimension_numbers = #tpu.dot_dimension_numbers<[1], [0], [0], [1], [0, 0, 1, 1], [], []>} : vector<32x16xf32>, vector<16x128xf32>, vector<32x128xf32> -> vector<32x128xf32>
    %c0_3 = arith.constant 0 : index
    %c0_4 = arith.constant 0 : index
    %3 = vector.load %arg3[%c0_3, %c0_4] : memref<128x256xf32, #tpu.memory_space<vmem>>, vector<128x256xf32>
    %cst_5 = arith.constant dense<0.000000e+00> : vector<32x256xf32>
    %4 = tpu.matmul %2, %3, %cst_5 {dimension_numbers = #tpu.dot_dimension_numbers<[1], [0], [0], [1], [0, 0, 1, 1], [], []>} : vector<32x128xf32>, vector<128x256xf32>, vector<32x256xf32> -> vector<32x256xf32>
    %c0_6 = arith.constant 0 : index
    %c0_7 = arith.constant 0 : index
    %5 = vector.load %arg4[%c0_6, %c0_7] : memref<32x256xf32, #tpu.memory_space<vmem>>, vector<32x256xf32>
    tpu.vector_store %arg4[%c0_6, %c0_7], %4 {strides = array<i32>} : memref<32x256xf32, #tpu.memory_space<vmem>>, vector<32x256xf32>,
    return
  }
  func.func @transform_0(%arg0: i32) -> (i32, i32) {
    %c0_i32 = arith.constant 0 : i32
    %c0_i32_0 = arith.constant 0 : i32
    return %c0_i32, %arg0 : i32, i32
  }
  func.func @transform_1(%arg0: i32) -> (i32, i32) {
    %c0_i32 = arith.constant 0 : i32
    %c0_i32_0 = arith.constant 0 : i32
    %c0_i32_1 = arith.constant 0 : i32
    return %c0_i32, %c0_i32_0 : i32, i32
  }
  func.func @transform_2(%arg0: i32) -> (i32, i32) {
    %c0_i32 = arith.constant 0 : i32
    %c0_i32_0 = arith.constant 0 : i32
    %c0_i32_1 = arith.constant 0 : i32
    return %c0_i32, %c0_i32_0 : i32, i32
  }
  func.func @transform_3(%arg0: i32) -> (i32, i32) {
    %c0_i32 = arith.constant 0 : i32
    %c0_i32_0 = arith.constant 0 : i32
    return %c0_i32, %arg0 : i32, i32
  }
}

</mosaic_0001>

<llo_original>
// kernel: interpolate.1
$region0: #{interpolate.1}
  #allocation0 [shape = 'u32[]', space=smem, size = 0x4, offset = 0x4, fixed_abs, tag = 'smem constant byte address 0x4 - core index']
  #allocation1 [shape = 'u32[144,128]{1,0:T(1,128)}', space=vmem, size = 0x12000, scoped, tag = 'internal scratch']
  %s0 = inlined_call_operand.vmem [shape: f32[16,128], index: 0, kind: input, shape index: {}]
  %s1 = inlined_call_operand.vmem [shape: f32[32,16], index: 1, kind: input, shape index: {}]
  %s2 = inlined_call_operand.vmem [shape: f32[128,256], index: 2, kind: input, shape index: {}]
  %s3 = inlined_call_operand.vmem [shape: f32[32,256], index: 3, kind: output, shape index: {}]
  %s4 = sld [smem:[#allocation0]]
  $region22: #{interpolate.1} parent=0
    _
  %s6 = ssub.s32 1, %s4
  %s7 = scalar_select 0, %s6, %s4
  // Predicated region
  $region2: #{interpolate.1} parent=0 // pred_check
    _
  $region3: #{interpolate.1} parent=0 // pred_check_branch
    %9 = sbr.rel (0) target = $region5
  $region4: #{interpolate.1} parent=0 // pred_region
    _
  $region5: #{interpolate.1} parent=0 // pred_fallthru
    _
  // Predicated region
  $region6: #{interpolate.1} parent=0 // pred_check
    _
  $region7: #{interpolate.1} parent=0 // pred_check_branch
    %11 = sbr.rel (0) target = $region9
  $region8: #{interpolate.1} parent=0 // pred_region
    _
  $region9: #{interpolate.1} parent=0 // pred_fallthru
    _
  // Predicated region
  $region10: #{interpolate.1} parent=0 // pred_check
    _
  $region11: #{interpolate.1} parent=0 // pred_check_branch
    %13 = sbr.rel (0) target = $region13
  $region12: #{interpolate.1} parent=0 // pred_region
    _
  $region13: #{interpolate.1} parent=0 // pred_fallthru
    _
  %v14 = vld [vmem:[%s1] sm:$0xff]
  %v15 = vld [vmem:[%s1 + $0x8] sm:$0xff]
  %v16 = vld [vmem:[%s1 + $0x10] sm:$0xff]
  %v17 = vld [vmem:[%s1 + $0x18] sm:$0xff]
  %v18 = vld [vmem:[%s0] sm:$0xff]
  %v19 = vld [vmem:[%s0 + $0x8] sm:$0xff]
  %vm20 = vcmask 130048
  %v22 = vsel %vm20, %v14, 0
  %v25 = vsel %vm20, %v15, 0
  %v28 = vsel %vm20, %v16, 0
  %v31 = vsel %vm20, %v17, 0
  %33 = vmatprep.subr.mxu0 0.0
  %34 = vmatpush1.msra.mxu0 %v18
  %35 = vmatprep.subr.mxu0 0.0
  %36 = vmatpush1.msra.mxu0 %v19
  %37 = vmatprep.subr.mxu0 0.0
  %38 = vmatpush1.msra.mxu0 0.0
  %39 = vmatprep.subr.mxu0 0.0
  %40 = vmatpush1.msra.mxu0 0.0
  %41 = vmatprep.subr.mxu0 0.0
  %42 = vmatpush1.msra.mxu0 0.0
  %43 = vmatprep.subr.mxu0 0.0
  %44 = vmatpush1.msra.mxu0 0.0
  %45 = vmatprep.subr.mxu0 0.0
  %46 = vmatpush1.msra.mxu0 0.0
  %47 = vmatprep.subr.mxu0 0.0
  %48 = vmatpush1.msra.mxu0 0.0
  %49 = vmatprep.subr.mxu0 0.0
  %50 = vmatpush1.msra.mxu0 0.0
  %51 = vmatprep.subr.mxu0 0.0
  %52 = vmatpush1.msra.mxu0 0.0
  %53 = vmatprep.subr.mxu0 0.0
  %54 = vmatpush1.msra.mxu0 0.0
  %55 = vmatprep.subr.mxu0 0.0
  %56 = vmatpush1.msra.mxu0 0.0
  %57 = vmatprep.subr.mxu0 0.0
  %58 = vmatpush1.msra.mxu0 0.0
  %59 = vmatprep.subr.mxu0 0.0
  %60 = vmatpush1.msra.mxu0 0.0
  %61 = vmatprep.subr.mxu0 0.0
  %62 = vmatpush1.msra.mxu0 0.0
  %63 = vmatprep.subr.mxu0 0.0
  %64 = vmatpush1.msra.mxu0 0.0
  %65 = vmatprep.subr.mxu0 0.0
  %66 = vmatpush1.msra.mxu0 0.0
  %67 = vmatprep.subr.mxu0 0.0
  %68 = vmatpush1.msra.mxu0 0.0
  %69 = vmatprep.subr.mxu0 0.0
  %70 = vmatpush1.msra.mxu0 0.0
  %71 = vmatprep.subr.mxu0 0.0
  %72 = vmatpush1.msra.mxu0 0.0
  %73 = vmatprep.subr.mxu0 0.0
  %74 = vmatpush1.msra.mxu0 0.0
  %75 = vmatprep.subr.mxu0 0.0
  %76 = vmatpush1.msra.mxu0 0.0
  %77 = vmatprep.subr.mxu0 0.0
  %78 = vmatpush1.msra.mxu0 0.0
  %79 = vmatprep.subr.mxu0 0.0
  %80 = vmatpush1.msra.mxu0 0.0
  %81 = vmatprep.subr.mxu0 0.0
  %82 = vmatpush1.msra.mxu0 0.0
  %83 = vmatprep.subr.mxu0 0.0
  %84 = vmatpush1.msra.mxu0 0.0
  %85 = vmatprep.subr.mxu0 0.0
  %86 = vmatpush1.msra.mxu0 0.0
  %87 = vmatprep.subr.mxu0 0.0
  %88 = vmatpush1.msra.mxu0 0.0
  %89 = vmatprep.subr.mxu0 0.0
  %90 = vmatpush1.msra.mxu0 0.0
  %91 = vmatprep.subr.mxu0 0.0
  %92 = vmatpush1.msra.mxu0 0.0
  %93 = vmatprep.subr.mxu0 0.0
  %94 = vmatpush1.msra.mxu0 0.0
  %95 = vmatprep.subr.mxu0 0.0
  %96 = vmatpush1.msra.mxu0 0.0
  %97 = vmatprep.mubr.f32.mxu0 0.0
  %98 = vmatmul.mubr.f32.gmra.mrb[0].mxu0 %v22
  %v99 = vpop.f32.mrb[0].mxu0
  %v100 = vadd.f32 0.0, %v99
  %v101 = vpop.f32.mrb[0].mxu0
  %102 = vmatprep.mubr.f32.mxu0 0.0
  %103 = vmatmul.mubr.f32.gmra.mrb[0].mxu0 %v25
  %v104 = vpop.f32.mrb[0].mxu0
  %v105 = vadd.f32 0.0, %v104
  %v106 = vpop.f32.mrb[0].mxu0
  %107 = vmatprep.mubr.f32.mxu0 0.0
  %108 = vmatmul.mubr.f32.gmra.mrb[0].mxu0 %v28
  %v109 = vpop.f32.mrb[0].mxu0
  %v110 = vadd.f32 0.0, %v109
  %v111 = vpop.f32.mrb[0].mxu0
  %112 = vmatprep.mubr.f32.mxu0 0.0
  %113 = vmatmul.mubr.f32.gmra.mrb[0].mxu0 %v31
  %v114 = vpop.f32.mrb[0].mxu0
  %v115 = vadd.f32 0.0, %v114
  %v116 = vpop.f32.mrb[0].mxu0
  %117 = vdwg.mxu0
  %v118 = vld [vmem:[%s2] sm:$0xff]
  %v119 = vld [vmem:[%s2 + $0x8] sm:$0xff]
  %v120 = vld [vmem:[%s2 + $0x10] sm:$0xff]
  %v121 = vld [vmem:[%s2 + $0x18] sm:$0xff]
  %v122 = vld [vmem:[%s2 + $0x20] sm:$0xff]
  %v123 = vld [vmem:[%s2 + $0x28] sm:$0xff]
  %v124 = vld [vmem:[%s2 + $0x30] sm:$0xff]
  %v125 = vld [vmem:[%s2 + $0x38] sm:$0xff]
  %v126 = vld [vmem:[%s2 + $0x40] sm:$0xff]
  %v127 = vld [vmem:[%s2 + $0x48] sm:$0xff]
  %v128 = vld [vmem:[%s2 + $0x50] sm:$0xff]
  %v129 = vld [vmem:[%s2 + $0x58] sm:$0xff]
  %v130 = vld [vmem:[%s2 + $0x60] sm:$0xff]
  %v131 = vld [vmem:[%s2 + $0x68] sm:$0xff]
  %v132 = vld [vmem:[%s2 + $0x70] sm:$0xff]
  %v133 = vld [vmem:[%s2 + $0x78] sm:$0xff]
  %v134 = vld [vmem:[%s2 + $0x80] sm:$0xff]
  %v135 = vld [vmem:[%s2 + $0x88] sm:$0xff]
  %v136 = vld [vmem:[%s2 + $0x90] sm:$0xff]
  %v137 = vld [vmem:[%s2 + $0x98] sm:$0xff]
  %v138 = vld [vmem:[%s2 + $0xa0] sm:$0xff]
  %v139 = vld [vmem:[%s2 + $0xa8] sm:$0xff]
  %v140 = vld [vmem:[%s2 + $0xb0] sm:$0xff]
  %v141 = vld [vmem:[%s2 + $0xb8] sm:$0xff]
  %v142 = vld [vmem:[%s2 + $0xc0] sm:$0xff]
  %v143 = vld [vmem:[%s2 + $0xc8] sm:$0xff]
  %v144 = vld [vmem:[%s2 + $0xd0] sm:$0xff]
  %v145 = vld [vmem:[%s2 + $0xd8] sm:$0xff]
  %v146 = vld [vmem:[%s2 + $0xe0] sm:$0xff]
  %v147 = vld [vmem:[%s2 + $0xe8] sm:$0xff]
  %v148 = vld [vmem:[%s2 + $0xf0] sm:$0xff]
  %v149 = vld [vmem:[%s2 + $0xf8] sm:$0xff]
  %150 = vmatprep.subr.mxu0 %v119
  %151 = vmatpush1.msra.mxu0 %v118
  %152 = vmatprep.subr.mxu0 %v121
  %153 = vmatpush1.msra.mxu0 %v120
  %154 = vmatprep.subr.mxu0 %v123
  %155 = vmatpush1.msra.mxu0 %v122
  %156 = vmatprep.subr.mxu0 %v125
  %157 = vmatpush1.msra.mxu0 %v124
  %158 = vmatprep.subr.mxu0 %v127
  %159 = vmatpush1.msra.mxu0 %v126
  %160 = vmatprep.subr.mxu0 %v129
  %161 = vmatpush1.msra.mxu0 %v128
  %162 = vmatprep.subr.mxu0 %v131
  %163 = vmatpush1.msra.mxu0 %v130
  %164 = vmatprep.subr.mxu0 %v133
  %165 = vmatpush1.msra.mxu0 %v132
  %166 = vmatprep.subr.mxu0 %v135
  %167 = vmatpush1.msra.mxu0 %v134
  %168 = vmatprep.subr.mxu0 %v137
  %169 = vmatpush1.msra.mxu0 %v136
  %170 = vmatprep.subr.mxu0 %v139
  %171 = vmatpush1.msra.mxu0 %v138
  %172 = vmatprep.subr.mxu0 %v141
  %173 = vmatpush1.msra.mxu0 %v140
  %174 = vmatprep.subr.mxu0 %v143
  %175 = vmatpush1.msra.mxu0 %v142
  %176 = vmatprep.subr.mxu0 %v145
  %177 = vmatpush1.msra.mxu0 %v144
  %178 = vmatprep.subr.mxu0 %v147
  %179 = vmatpush1.msra.mxu0 %v146
  %180 = vmatprep.subr.mxu0 %v149
  %181 = vmatpush1.msra.mxu0 %v148
  %182 = vmatprep.subr.mxu0 0.0
  %183 = vmatpush1.msra.mxu0 0.0
  %184 = vmatprep.subr.mxu0 0.0
  %185 = vmatpush1.msra.mxu0 0.0
  %186 = vmatprep.subr.mxu0 0.0
  %187 = vmatpush1.msra.mxu0 0.0
  %188 = vmatprep.subr.mxu0 0.0
  %189 = vmatpush1.msra.mxu0 0.0
  %190 = vmatprep.subr.mxu0 0.0
  %191 = vmatpush1.msra.mxu0 0.0
  %192 = vmatprep.subr.mxu0 0.0
  %193 = vmatpush1.msra.mxu0 0.0
  %194 = vmatprep.subr.mxu0 0.0
  %195 = vmatpush1.msra.mxu0 0.0
  %196 = vmatprep.subr.mxu0 0.0
  %197 = vmatpush1.msra.mxu0 0.0
  %198 = vmatprep.subr.mxu0 0.0
  %199 = vmatpush1.msra.mxu0 0.0
  %200 = vmatprep.subr.mxu0 0.0
  %201 = vmatpush1.msra.mxu0 0.0
  %202 = vmatprep.subr.mxu0 0.0
  %203 = vmatpush1.msra.mxu0 0.0
  %204 = vmatprep.subr.mxu0 0.0
  %205 = vmatpush1.msra.mxu0 0.0
  %206 = vmatprep.subr.mxu0 0.0
  %207 = vmatpush1.msra.mxu0 0.0
  %208 = vmatprep.subr.mxu0 0.0
  %209 = vmatpush1.msra.mxu0 0.0
  %210 = vmatprep.subr.mxu0 0.0
  %211 = vmatpush1.msra.mxu0 0.0
  %212 = vmatprep.subr.mxu0 0.0
  %213 = vmatpush1.msra.mxu0 0.0
  %214 = vmatprep.mubr.f32.mxu0 0.0
  %215 = vmatmul.mubr.f32.gmra.mrb[0].mxu0 %v100
  %v216 = vpop.f32.mrb[0].mxu0
  %v217 = vadd.f32 0.0, %v216
  %v218 = vpop.f32.mrb[0].mxu0
  %v219 = vadd.f32 0.0, %v218
  %220 = vmatprep.mubr.f32.mxu0 0.0
  %221 = vmatmul.mubr.f32.gmra.mrb[0].mxu0 %v105
  %v222 = vpop.f32.mrb[0].mxu0
  %v223 = vadd.f32 0.0, %v222
  %v224 = vpop.f32.mrb[0].mxu0
  %v225 = vadd.f32 0.0, %v224
  %226 = vmatprep.mubr.f32.mxu0 0.0
  %227 = vmatmul.mubr.f32.gmra.mrb[0].mxu0 %v110
  %v228 = vpop.f32.mrb[0].mxu0
  %v229 = vadd.f32 0.0, %v228
  %v230 = vpop.f32.mrb[0].mxu0
  %v231 = vadd.f32 0.0, %v230
  %232 = vmatprep.mubr.f32.mxu0 0.0
  %233 = vmatmul.mubr.f32.gmra.mrb[0].mxu0 %v115
  %v234 = vpop.f32.mrb[0].mxu0
  %v235 = vadd.f32 0.0, %v234
  %v236 = vpop.f32.mrb[0].mxu0
  %v237 = vadd.f32 0.0, %v236
  %238 = vdwg.mxu0
  %239 = vst [vmem:[%s3] sm:$0xff] %v217
  %240 = vst [vmem:[%s3 + $0x8] sm:$0xff] %v219
  %241 = vst [vmem:[%s3 + $0x10] sm:$0xff] %v223
  %242 = vst [vmem:[%s3 + $0x18] sm:$0xff] %v225
  %243 = vst [vmem:[%s3 + $0x20] sm:$0xff] %v229
  %244 = vst [vmem:[%s3 + $0x28] sm:$0xff] %v231
  %245 = vst [vmem:[%s3 + $0x30] sm:$0xff] %v235
  %246 = vst [vmem:[%s3 + $0x38] sm:$0xff] %v237
  // Predicated region
  $region14: #{interpolate.1} parent=0 // pred_check
    _
  $region15: #{interpolate.1} parent=0 // pred_check_branch
    %248 = sbr.rel (0) target = $region17
  $region16: #{interpolate.1} parent=0 // pred_region
    _
  $region17: #{interpolate.1} parent=0 // pred_fallthru
    _
  // Predicated region
  $region18: #{interpolate.1} parent=0 // pred_check
    _
  $region19: #{interpolate.1} parent=0 // pred_check_branch
    %250 = sbr.rel (0) target = $region21
  $region20: #{interpolate.1} parent=0 // pred_region
    _
  $region21: #{interpolate.1} parent=0 // pred_fallthru
    _

</llo_original>
